<compile_context>
chip_gen: v6e
topology: v6e:2x2x1
jax: 0.10.0
libtpu: 0.0.40
codegen_flags: <defaults>
</compile_context>

<pallas_src>
import jax
import jax.numpy as jnp
from jax.experimental import pallas as pl
from jax.experimental.pallas import tpu as pltpu


def _round_up(x, m):
    return ((x + m - 1) // m) * m


# ---------------------------------------------------------------------------
# Kernels
# ---------------------------------------------------------------------------
def linear_relu_kernel(h_ref, w_ref, b_ref, o_ref, acc_ref):
    """Hidden mask layer: o = relu(h @ W + b), K-tiled matmul on the MXU."""
    @pl.when(pl.program_id(2) == 0)
    def _():
        acc_ref[...] = jnp.zeros_like(acc_ref)

    acc_ref[...] += jnp.dot(h_ref[...], w_ref[...],
                            preferred_element_type=jnp.float32)

    @pl.when(pl.program_id(2) == pl.num_programs(2) - 1)
    def _():
        o_ref[...] = jnp.maximum(acc_ref[...] + b_ref[...], 0.0).astype(o_ref.dtype)


def linear_relu_mask_kernel(h_ref, w_ref, b_ref, x_ref, o_ref, acc_ref):
    """Final mask layer fused with the dropout apply:
         act  = relu(h @ W + b)
         keep = sigmoid(act) >= 0.5   ==   act >= 0   (monotone sigmoid)
         o    = keep * x
    """
    @pl.when(pl.program_id(2) == 0)
    def _():
        acc_ref[...] = jnp.zeros_like(acc_ref)

    acc_ref[...] += jnp.dot(h_ref[...], w_ref[...],
                            preferred_element_type=jnp.float32)

    @pl.when(pl.program_id(2) == pl.num_programs(2) - 1)
    def _():
        act = jnp.maximum(acc_ref[...] + b_ref[...], 0.0)
        keep = act >= 0.0                      # bit-identical to sigmoid(act) >= 0.5
        o_ref[...] = jnp.where(keep, x_ref[...], 0.0).astype(o_ref.dtype)


# ---------------------------------------------------------------------------
# pallas_call builders
# ---------------------------------------------------------------------------
def _build_layer_call(kernel_fn, B_pad, G_pad, tile_b, tile_n, tile_k,
                      out_dtype, with_x):
    grid = (B_pad // tile_b, G_pad // tile_n, G_pad // tile_k)

    in_specs = [
        pl.BlockSpec((tile_b, tile_k), lambda i, j, k: (i, k)),   # activations (bf16)
        pl.BlockSpec((tile_k, tile_n), lambda i, j, k: (k, j)),   # weights (in, out), bf16
        pl.BlockSpec((1, tile_n),      lambda i, j, k: (0, j)),   # bias (f32)
    ]
    if with_x:
        # Block index ignores k -> this tile is only re-fetched when (i, j) changes.
        in_specs.append(pl.BlockSpec((tile_b, tile_n), lambda i, j, k: (i, j)))

    out_bytes = jnp.dtype(out_dtype).itemsize
    vmem_need = (
        2 * tile_b * tile_k * 2                            # activation tiles, double-buffered
        + 2 * tile_k * tile_n * 2                          # weight tiles, double-buffered
        + 2 * 8 * tile_n * 4                               # bias (pads to 8 sublanes)
        + (2 * tile_b * tile_n * 4 if with_x else 0)       # x tiles (final layer only)
        + 2 * tile_b * tile_n * out_bytes                  # output tiles
        + tile_b * tile_n * 4                              # f32 accumulator scratch
    )
    # Cap at 48 MiB: comfortable headroom below v7x's 64 MiB per-TC physical VMEM.
    vmem_limit = int(min(max(2 * vmem_need, 8 << 20), 48 << 20))

    return pl.pallas_call(
        kernel_fn,
        out_shape=jax.ShapeDtypeStruct((B_pad, G_pad), out_dtype),
        grid_spec=pltpu.PrefetchScalarGridSpec(
            num_scalar_prefetch=0,
            grid=grid,
            in_specs=in_specs,
            out_specs=pl.BlockSpec((tile_b, tile_n), lambda i, j, k: (i, j)),
            scratch_shapes=[pltpu.VMEM((tile_b, tile_n), jnp.float32)],
        ),
        compiler_params=pltpu.CompilerParams(
            dimension_semantics=("parallel", "parallel", "arbitrary"),
            vmem_limit_bytes=vmem_limit,
        ),
    )


def _pick_tiles(B, G_pad):
    # Batch tile: one block for small batches (single-TC v5e/v6e pay ~0.35 us per
    # extra grid step), 256-row tiles otherwise to fill the 2x256^2 MXU on
    # v6e/v7x while keeping the f32/bf16 activation tiles modest in VMEM.
    b8 = _round_up(B, 8)
    if b8 <= 256:
        tile_b, B_pad = b8, b8
    else:
        tile_b, B_pad = 256, _round_up(B, 256)
    # N / K tiles: lane-dense (multiple of 128); 256 / 512 only when G_pad already
    # allows it, so v5e (4x128^2 MXU) is never over-padded.
    tile_n = 256 if (G_pad % 256 == 0) else 128
    tile_k = next(t for t in (512, 256, 128) if G_pad % t == 0)
    return tile_b, B_pad, tile_n, tile_k


# ---------------------------------------------------------------------------
# Wrapper
# ---------------------------------------------------------------------------
def linear_dropout(x, weights, biases, *, exploit_final_relu_identity=False):
    """Forward pass of Linear_Dropout.

    x:       (B, G)    float32
    weights: (L, G, G) Linear weights in PyTorch (out_features, in_features) layout
    biases:  (L, G)
    """
    B, G = x.shape
    L, G_out, G_in = weights.shape
    assert G_out == G and G_in == G and biases.shape == (L, G)

    if exploit_final_relu_identity:
        # The reference applies ReLU to the *last* layer too, so the pre-sigmoid
        # activation is >= 0, sigmoid(act) >= 0.5 everywhere, and y == x exactly.
        # This drops all matmul FLOPs and all weight HBM/VMEM traffic.
        return x

    G_pad = _round_up(G, 128)
    tile_b, B_pad, tile_n, tile_k = _pick_tiles(B, G_pad)

    x_pad = x
    if (B_pad, G_pad) != (B, G):
        x_pad = jnp.pad(x, ((0, B_pad - B), (0, G_pad - G)))

    # One-time HBM-level layout fix: (out, in) -> (in, out), bf16 cast, zero-pad.
    w_t = jnp.transpose(weights, (0, 2, 1)).astype(jnp.bfloat16)
    b_pad = biases.astype(jnp.float32).reshape(L, 1, G)
    if G_pad != G:
        w_t = jnp.pad(w_t, ((0, 0), (0, G_pad - G), (0, G_pad - G)))
        b_pad = jnp.pad(b_pad, ((0, 0), (0, 0), (0, G_pad - G)))

    hidden_call = _build_layer_call(linear_relu_kernel, B_pad, G_pad, tile_b,
                                    tile_n, tile_k, jnp.bfloat16, with_x=False)
    final_call = _build_layer_call(linear_relu_mask_kernel, B_pad, G_pad, tile_b,
                                   tile_n, tile_k, x.dtype, with_x=True)

    h = x_pad.astype(jnp.bfloat16)
    for i in range(L - 1):                                # static layer loop
        h = hidden_call(h, w_t[i], b_pad[i])
    y = final_call(h, w_t[L - 1], b_pad[L - 1], x_pad)

    if (B_pad, G_pad) != (B, G):
        y = y[:B, :G]
    return y


# ---------------------------------------------------------------------------
# Params / reference / demo
# ---------------------------------------------------------------------------
def init_params(key, num_genes, num_layers=2):
    # Matches nn.Linear's default uniform(-1/sqrt(in), 1/sqrt(in)) init.
    bound = 1.0 / jnp.sqrt(jnp.float32(num_genes))
    kw, kb = jax.random.split(key)
    weights = jax.random.uniform(
        kw, (num_layers, num_genes, num_genes), jnp.float32, -bound, bound)
    biases = jax.random.uniform(
        kb, (num_layers, num_genes), jnp.float32, -bound, bound)
    return weights, biases


def reference(x, weights, biases):
    h = x
    for i in range(weights.shape[0]):
        h = jnp.maximum(h @ weights[i].T + biases[i], 0.0)
    m = jax.nn.sigmoid(h)
    return jnp.where(m >= 0.5, x, 0.0)


if __name__ == "__main__":
    # Small shapes; B=12 / G=200 exercise both the batch (->16) and gene (->256)
    # zero-padding paths.
    B, G = 12, 200
    key = jax.random.PRNGKey(0)
    kx, kp = jax.random.split(key)
    x = jax.random.normal(kx, (B, G), jnp.float32)
    weights, biases = init_params(kp, G, num_layers=2)

    y = jax.block_until_ready(linear_dropout(x, weights, biases))

    y_ref = reference(x, weights, biases)
    assert y.shape == y_ref.shape
    assert jnp.allclose(y, y_ref, atol=1e-5, rtol=1e-5), "mismatch vs. reference"

    # Provable-identity fast path (final-layer ReLU => all-ones mask => y == x).
    y_fast = jax.block_until_ready(
        linear_dropout(x, weights, biases, exploit_final_relu_identity=True))
    assert jnp.allclose(y_fast, y_ref, atol=1e-5, rtol=1e-5)

    print("KERNEL_OK")
</pallas_src>

<mosaic_0001>
module attributes {stable_mosaic.version = 11 : i64} {
  func.func @linear_relu_kernel(%arg0: i32, %arg1: i32, %arg2: i32, %arg3: memref<16x256xbf16, #tpu.memory_space<vmem>>, %arg4: memref<256x256xbf16, #tpu.memory_space<vmem>>, %arg5: memref<1x256xf32, #tpu.memory_space<vmem>>, %arg6: memref<16x256xbf16, #tpu.memory_space<vmem>>, %arg7: memref<16x256xf32, #tpu.memory_space<vmem>>) attributes {dimension_semantics = [#tpu.dimension_semantics<parallel>, #tpu.dimension_semantics<parallel>, #tpu.dimension_semantics<arbitrary>], iteration_bounds = array<i64: 1, 1, 1>, scalar_prefetch = 0 : i64, scratch_operands = 1 : i64, tpu.core_type = #tpu.core_type<tc>, window_params = [{transform_indices = @transform_0, window_bounds = array<i64: 16, 256>}, {transform_indices = @transform_1, window_bounds = array<i64: 256, 256>}, {transform_indices = @transform_2, window_bounds = array<i64: 1, 256>}, {transform_indices = @transform_3, window_bounds = array<i64: 16, 256>}]} {
    %c0_i32 = arith.constant 0 : i32
    %0 = arith.cmpi eq, %arg2, %c0_i32 : i32
    %1 = arith.extui %0 : i1 to i32
    %c0_i32_0 = arith.constant 0 : i32
    %2 = arith.cmpi ne, %1, %c0_i32_0 : i32
    scf.if %2 {
      %cst_10 = arith.constant 0.000000e+00 : f32
      %12 = vector.broadcast %cst_10 : f32 to vector<16x256xf32>
      %c0_11 = arith.constant 0 : index
      %c0_12 = arith.constant 0 : index
      %13 = vector.load %arg7[%c0_11, %c0_12] : memref<16x256xf32, #tpu.memory_space<vmem>>, vector<16x256xf32>
      tpu.vector_store %arg7[%c0_11, %c0_12], %12 {strides = array<i32>} : memref<16x256xf32, #tpu.memory_space<vmem>>, vector<16x256xf32>,
    } else {
    }
    %c0 = arith.constant 0 : index
    %c0_1 = arith.constant 0 : index
    %3 = vector.load %arg7[%c0, %c0_1] : memref<16x256xf32, #tpu.memory_space<vmem>>, vector<16x256xf32>
    %c0_2 = arith.constant 0 : index
    %c0_3 = arith.constant 0 : index
    %4 = vector.load %arg3[%c0_2, %c0_3] : memref<16x256xbf16, #tpu.memory_space<vmem>>, vector<16x256xbf16>
    %c0_4 = arith.constant 0 : index
    %c0_5 = arith.constant 0 : index
    %5 = vector.load %arg4[%c0_4, %c0_5] : memref<256x256xbf16, #tpu.memory_space<vmem>>, vector<256x256xbf16>
    %cst = arith.constant dense<0.000000e+00> : vector<16x256xf32>
    %6 = tpu.matmul %4, %5, %cst {dimension_numbers = #tpu.dot_dimension_numbers<[1], [0], [0], [1], [0, 0, 1, 1], [], []>} : vector<16x256xbf16>, vector<256x256xbf16>, vector<16x256xf32> -> vector<16x256xf32>
    %7 = arith.addf %3, %6 : vector<16x256xf32>
    %c0_6 = arith.constant 0 : index
    %c0_7 = arith.constant 0 : index
    %8 = vector.load %arg7[%c0_6, %c0_7] : memref<16x256xf32, #tpu.memory_space<vmem>>, vector<16x256xf32>
    tpu.vector_store %arg7[%c0_6, %c0_7], %7 {strides = array<i32>} : memref<16x256xf32, #tpu.memory_space<vmem>>, vector<16x256xf32>,
    %c0_i32_8 = arith.constant 0 : i32
    %9 = arith.cmpi eq, %arg2, %c0_i32_8 : i32
    %10 = arith.extui %9 : i1 to i32
    %c0_i32_9 = arith.constant 0 : i32
    %11 = arith.cmpi ne, %10, %c0_i32_9 : i32
    scf.if %11 {
      %c0_10 = arith.constant 0 : index
      %c0_11 = arith.constant 0 : index
      %12 = vector.load %arg7[%c0_10, %c0_11] : memref<16x256xf32, #tpu.memory_space<vmem>>, vector<16x256xf32>
      %c0_12 = arith.constant 0 : index
      %c0_13 = arith.constant 0 : index
      %13 = vector.load %arg5[%c0_12, %c0_13] : memref<1x256xf32, #tpu.memory_space<vmem>>, vector<1x256xf32>
      %14 = vector.broadcast %13 : vector<1x256xf32> to vector<16x256xf32>
      %15 = arith.addf %12, %14 : vector<16x256xf32>
      %cst_14 = arith.constant 0.000000e+00 : f32
      %16 = vector.broadcast %cst_14 : f32 to vector<16x256xf32>
      %17 = arith.maximumf %15, %16 : vector<16x256xf32>
      %18 = arith.truncf %17 : vector<16x256xf32> to vector<16x256xbf16>
      %c0_15 = arith.constant 0 : index
      %c0_16 = arith.constant 0 : index
      %19 = vector.load %arg6[%c0_15, %c0_16] : memref<16x256xbf16, #tpu.memory_space<vmem>>, vector<16x256xbf16>
      tpu.vector_store %arg6[%c0_15, %c0_16], %18 {strides = array<i32>} : memref<16x256xbf16, #tpu.memory_space<vmem>>, vector<16x256xbf16>,
    } else {
    }
    return
  }
  func.func @transform_0(%arg0: i32, %arg1: i32, %arg2: i32) -> (i32, i32) {
    %c0_i32 = arith.constant 0 : i32
    return %arg0, %arg2 : i32, i32
  }
  func.func @transform_1(%arg0: i32, %arg1: i32, %arg2: i32) -> (i32, i32) {
    %c0_i32 = arith.constant 0 : i32
    return %arg2, %arg1 : i32, i32
  }
  func.func @transform_2(%arg0: i32, %arg1: i32, %arg2: i32) -> (i32, i32) {
    %c0_i32 = arith.constant 0 : i32
    %c0_i32_0 = arith.constant 0 : i32
    return %c0_i32, %arg1 : i32, i32
  }
  func.func @transform_3(%arg0: i32, %arg1: i32, %arg2: i32) -> (i32, i32) {
    %c0_i32 = arith.constant 0 : i32
    return %arg0, %arg1 : i32, i32
  }
}

</mosaic_0001>

<llo_original>
// kernel: tpu_custom_call.1
$region0: #{tpu_custom_call.1}
  #allocation0 [shape = 'u32[]', space=smem, size = 0x4, offset = 0x4, fixed_abs, tag = 'smem constant byte address 0x4 - core index']
  #allocation1 [shape = 'u32[144,128]{1,0:T(1,128)}', space=vmem, size = 0x12000, scoped, tag = 'internal scratch']
  #allocation2 [shape = 'f32[16,256]{1,0:T(8,128)}', space=vmem, size = 0x4000, scoped, tag = 'scratch operand']
  %s0 = inlined_call_operand.hbm [shape: bf16[16,256], index: 0, kind: input, shape index: {}]
  %s1 = inlined_call_operand.hbm [shape: bf16[256,256], index: 1, kind: input, shape index: {}]
  %s2 = inlined_call_operand.vmem [shape: f32[1,256], index: 2, kind: input, shape index: {}]
  %s3 = inlined_call_operand.hbm [shape: bf16[16,256], index: 3, kind: output, shape index: {}]
  %s4 = sld [smem:[#allocation0]]
  $region38: #{tpu_custom_call.1} parent=0
    _
  %s6 = ssub.s32 1, %s4
  %s7 = scalar_select 0, %s6, %s4
  $region1: #{tpu_custom_call.1} parent=0
    #allocation3 [shape = 'u8[8192]{0}', space=vmem, size = 0x2000, scoped, tag = 'input window, operand 0, single buffered']
    #allocation4 [shape = 's32[1]{0}', space=sflag, size = 0x4, scoped, tag = 'scoped memory for tpu_custom_call.1']
    #allocation5 [shape = 's32[1]{0}', space=sflag, size = 0x4, scoped, tag = 'scoped memory for tpu_custom_call.1']
    #allocation6 [shape = 'u8[131072]{0}', space=vmem, size = 0x20000, scoped, tag = 'input window, operand 1, single buffered']
    #allocation7 [shape = 's32[1]{0}', space=sflag, size = 0x4, scoped, tag = 'scoped memory for tpu_custom_call.1']
    #allocation8 [shape = 'u8[8192]{0}', space=vmem, size = 0x2000, scoped, tag = 'output window, operand 0, single buffered']
    %8 = vsyncpa [#allocation4], 0
    %9 = vsyncpa [#allocation7], 0
    %10 = vsyncpa [#allocation5], 0
    // Predicated region
    $region2: #{tpu_custom_call.1} parent=1 // pred_check
      _
    $region3: #{tpu_custom_call.1} parent=1 // pred_check_branch
      %12 = sbr.rel (0) target = $region5
    $region4: #{tpu_custom_call.1} parent=1 // pred_region
      %s14 = ssub.s32 256, 256
      %15 = vsyncadd [#allocation4], %s14
      %s16 = sshll.u32 [#allocation3], 4
      %s17 = int_to_ptr.vmem [resolvable:$true] %s16
      %22 = dma.hbm_to_vmem [thread:$0]  %s0, 256, %s17, [#allocation4], 128, 128, 8
    $region5: #{tpu_custom_call.1} parent=1 // pred_fallthru
      _
    // Predicated region
    $region6: #{tpu_custom_call.1} parent=1 // pred_check
      _
    $region7: #{tpu_custom_call.1} parent=1 // pred_check_branch
      %24 = sbr.rel (0) target = $region9
    $region8: #{tpu_custom_call.1} parent=1 // pred_region
      %s26 = ssub.s32 4096, 4096
      %27 = vsyncadd [#allocation7], %s26
      %s28 = sshll.u32 [#allocation6], 4
      %s29 = int_to_ptr.vmem [resolvable:$true] %s28
      %34 = dma.hbm_to_vmem [thread:$0]  %s1, 4096, %s29, [#allocation7], 128, 128, 8
    $region9: #{tpu_custom_call.1} parent=1 // pred_fallthru
      _
    // Predicated region
    $region10: #{tpu_custom_call.1} parent=1 // pred_check
      _
    $region11: #{tpu_custom_call.1} parent=1 // pred_check_branch
      %36 = sbr.rel (0) target = $region13
    $region12: #{tpu_custom_call.1} parent=1 // pred_region
      _
    $region13: #{tpu_custom_call.1} parent=1 // pred_fallthru
      _
    // Predicated region
    $region14: #{tpu_custom_call.1} parent=1 // pred_check
      _
    $region15: #{tpu_custom_call.1} parent=1 // pred_check_branch
      %38 = sbr.rel (0) target = $region17
    $region16: #{tpu_custom_call.1} parent=1 // pred_region
      %39 = dma.done [#allocation4], 256
    $region17: #{tpu_custom_call.1} parent=1 // pred_fallthru
      _
    // Predicated region
    $region18: #{tpu_custom_call.1} parent=1 // pred_check
      _
    $region19: #{tpu_custom_call.1} parent=1 // pred_check_branch
      %41 = sbr.rel (0) target = $region21
    $region20: #{tpu_custom_call.1} parent=1 // pred_region
      %42 = dma.done [#allocation7], 4096
    $region21: #{tpu_custom_call.1} parent=1 // pred_fallthru
      _
    %p43 = scmp.eq.s32.totalorder 0, 0
    // Predicated region
    $region22: #{tpu_custom_call.1} parent=1 // pred_check
      %p44 = pneg %p43
    $region23: #{tpu_custom_call.1} parent=1 // pred_check_branch
      %46 = sbr.rel (%p44) target = $region25
    $region24: #{tpu_custom_call.1} parent=1 // pred_region
      %47 = vst [vmem:[#allocation2] sm:$0xff] 0.0
      %48 = vst [vmem:[#allocation2 + $0x8] sm:$0xff] 0.0
      %49 = vst [vmem:[#allocation2 + $0x10] sm:$0xff] 0.0
      %50 = vst [vmem:[#allocation2 + $0x18] sm:$0xff] 0.0
    $region25: #{tpu_custom_call.1} parent=1 // pred_fallthru
      _
    %v51 = vld [vmem:[#allocation2] sm:$0xff]
    %v52 = vld [vmem:[#allocation2 + $0x8] sm:$0xff]
    %v53 = vld [vmem:[#allocation2 + $0x10] sm:$0xff]
    %v54 = vld [vmem:[#allocation2 + $0x18] sm:$0xff]
    %v55 = vld [vmem:[#allocation3] sm:$0xff]
    %v56 = vld [vmem:[#allocation3 + $0x8] sm:$0xff]
    %v57 = vld [vmem:[#allocation6] sm:$0xff]
    %v58 = vld [vmem:[#allocation6 + $0x8] sm:$0xff]
    %v59 = vld [vmem:[#allocation6 + $0x10] sm:$0xff]
    %v60 = vld [vmem:[#allocation6 + $0x18] sm:$0xff]
    %v61 = vld [vmem:[#allocation6 + $0x20] sm:$0xff]
    %v62 = vld [vmem:[#allocation6 + $0x28] sm:$0xff]
    %v63 = vld [vmem:[#allocation6 + $0x30] sm:$0xff]
    %v64 = vld [vmem:[#allocation6 + $0x38] sm:$0xff]
    %v65 = vld [vmem:[#allocation6 + $0x40] sm:$0xff]
    %v66 = vld [vmem:[#allocation6 + $0x48] sm:$0xff]
    %v67 = vld [vmem:[#allocation6 + $0x50] sm:$0xff]
    %v68 = vld [vmem:[#allocation6 + $0x58] sm:$0xff]
    %v69 = vld [vmem:[#allocation6 + $0x60] sm:$0xff]
    %v70 = vld [vmem:[#allocation6 + $0x68] sm:$0xff]
    %v71 = vld [vmem:[#allocation6 + $0x70] sm:$0xff]
    %v72 = vld [vmem:[#allocation6 + $0x78] sm:$0xff]
    %v73 = vld [vmem:[#allocation6 + $0x80] sm:$0xff]
    %v74 = vld [vmem:[#allocation6 + $0x88] sm:$0xff]
    %v75 = vld [vmem:[#allocation6 + $0x90] sm:$0xff]
    %v76 = vld [vmem:[#allocation6 + $0x98] sm:$0xff]
    %v77 = vld [vmem:[#allocation6 + $0xa0] sm:$0xff]
    %v78 = vld [vmem:[#allocation6 + $0xa8] sm:$0xff]
    %v79 = vld [vmem:[#allocation6 + $0xb0] sm:$0xff]
    %v80 = vld [vmem:[#allocation6 + $0xb8] sm:$0xff]
    %v81 = vld [vmem:[#allocation6 + $0xc0] sm:$0xff]
    %v82 = vld [vmem:[#allocation6 + $0xc8] sm:$0xff]
    %v83 = vld [vmem:[#allocation6 + $0xd0] sm:$0xff]
    %v84 = vld [vmem:[#allocation6 + $0xd8] sm:$0xff]
    %v85 = vld [vmem:[#allocation6 + $0xe0] sm:$0xff]
    %v86 = vld [vmem:[#allocation6 + $0xe8] sm:$0xff]
    %v87 = vld [vmem:[#allocation6 + $0xf0] sm:$0xff]
    %v88 = vld [vmem:[#allocation6 + $0xf8] sm:$0xff]
    %v91 = vunpack.c.l.b16 %v55
    %v92 = vunpack.c.h.b16 %v55
    %v93 = vunpack.c.l.b16 %v56
    %v94 = vunpack.c.h.b16 %v56
    %v95 = vpack.c.b16 %v93, %v91
    %v96 = vpack.c.b16 %v94, %v92
    %v131 = vunpack.c.l.b16 %v57
    %v132 = vunpack.c.h.b16 %v57
    %v133 = vunpack.c.l.b16 %v58
    %v134 = vunpack.c.h.b16 %v58
    %v135 = vunpack.c.l.b16 %v59
    %v136 = vunpack.c.h.b16 %v59
    %v137 = vunpack.c.l.b16 %v60
    %v138 = vunpack.c.h.b16 %v60
    %v139 = vunpack.c.l.b16 %v61
    %v140 = vunpack.c.h.b16 %v61
    %v141 = vunpack.c.l.b16 %v62
    %v142 = vunpack.c.h.b16 %v62
    %v143 = vunpack.c.l.b16 %v63
    %v144 = vunpack.c.h.b16 %v63
    %v145 = vunpack.c.l.b16 %v64
    %v146 = vunpack.c.h.b16 %v64
    %v147 = vunpack.c.l.b16 %v65
    %v148 = vunpack.c.h.b16 %v65
    %v149 = vunpack.c.l.b16 %v66
    %v150 = vunpack.c.h.b16 %v66
    %v151 = vunpack.c.l.b16 %v67
    %v152 = vunpack.c.h.b16 %v67
    %v153 = vunpack.c.l.b16 %v68
    %v154 = vunpack.c.h.b16 %v68
    %v155 = vunpack.c.l.b16 %v69
    %v156 = vunpack.c.h.b16 %v69
    %v157 = vunpack.c.l.b16 %v70
    %v158 = vunpack.c.h.b16 %v70
    %v159 = vunpack.c.l.b16 %v71
    %v160 = vunpack.c.h.b16 %v71
    %v161 = vunpack.c.l.b16 %v72
    %v162 = vunpack.c.h.b16 %v72
    %v163 = vunpack.c.l.b16 %v73
    %v164 = vunpack.c.h.b16 %v73
    %v165 = vunpack.c.l.b16 %v74
    %v166 = vunpack.c.h.b16 %v74
    %v167 = vunpack.c.l.b16 %v75
    %v168 = vunpack.c.h.b16 %v75
    %v169 = vunpack.c.l.b16 %v76
    %v170 = vunpack.c.h.b16 %v76
    %v171 = vunpack.c.l.b16 %v77
    %v172 = vunpack.c.h.b16 %v77
    %v173 = vunpack.c.l.b16 %v78
    %v174 = vunpack.c.h.b16 %v78
    %v175 = vunpack.c.l.b16 %v79
    %v176 = vunpack.c.h.b16 %v79
    %v177 = vunpack.c.l.b16 %v80
    %v178 = vunpack.c.h.b16 %v80
    %v179 = vunpack.c.l.b16 %v81
    %v180 = vunpack.c.h.b16 %v81
    %v181 = vunpack.c.l.b16 %v82
    %v182 = vunpack.c.h.b16 %v82
    %v183 = vunpack.c.l.b16 %v83
    %v184 = vunpack.c.h.b16 %v83
    %v185 = vunpack.c.l.b16 %v84
    %v186 = vunpack.c.h.b16 %v84
    %v187 = vunpack.c.l.b16 %v85
    %v188 = vunpack.c.h.b16 %v85
    %v189 = vunpack.c.l.b16 %v86
    %v190 = vunpack.c.h.b16 %v86
    %v191 = vunpack.c.l.b16 %v87
    %v192 = vunpack.c.h.b16 %v87
    %v193 = vunpack.c.l.b16 %v88
    %v194 = vunpack.c.h.b16 %v88
    %v195 = vpack.c.b16 %v133, %v131
    %v196 = vpack.c.b16 %v134, %v132
    %v197 = vpack.c.b16 %v137, %v135
    %v198 = vpack.c.b16 %v138, %v136
    %v199 = vpack.c.b16 %v141, %v139
    %v200 = vpack.c.b16 %v142, %v140
    %v201 = vpack.c.b16 %v145, %v143
    %v202 = vpack.c.b16 %v146, %v144
    %v203 = vpack.c.b16 %v149, %v147
    %v204 = vpack.c.b16 %v150, %v148
    %v205 = vpack.c.b16 %v153, %v151
    %v206 = vpack.c.b16 %v154, %v152
    %v207 = vpack.c.b16 %v157, %v155
    %v208 = vpack.c.b16 %v158, %v156
    %v209 = vpack.c.b16 %v161, %v159
    %v210 = vpack.c.b16 %v162, %v160
    %v211 = vpack.c.b16 %v165, %v163
    %v212 = vpack.c.b16 %v166, %v164
    %v213 = vpack.c.b16 %v169, %v167
    %v214 = vpack.c.b16 %v170, %v168
    %v215 = vpack.c.b16 %v173, %v171
    %v216 = vpack.c.b16 %v174, %v172
    %v217 = vpack.c.b16 %v177, %v175
    %v218 = vpack.c.b16 %v178, %v176
    %v219 = vpack.c.b16 %v181, %v179
    %v220 = vpack.c.b16 %v182, %v180
    %v221 = vpack.c.b16 %v185, %v183
    %v222 = vpack.c.b16 %v186, %v184
    %v223 = vpack.c.b16 %v189, %v187
    %v224 = vpack.c.b16 %v190, %v188
    %v225 = vpack.c.b16 %v193, %v191
    %v226 = vpack.c.b16 %v194, %v192
    %259 = vmatprep.subr.bf16.mxu0 %v210
    %260 = vmatpush1.bf16.msra.mxu0 %v209
    %261 = vmatprep.subr.bf16.mxu0 %v208
    %262 = vmatpush1.bf16.msra.mxu0 %v207
    %263 = vmatprep.subr.bf16.mxu0 %v206
    %264 = vmatpush1.bf16.msra.mxu0 %v205
    %265 = vmatprep.subr.bf16.mxu0 %v204
    %266 = vmatpush1.bf16.msra.mxu0 %v203
    %267 = vmatprep.subr.bf16.mxu0 %v202
    %268 = vmatpush1.bf16.msra.mxu0 %v201
    %269 = vmatprep.subr.bf16.mxu0 %v200
    %270 = vmatpush1.bf16.msra.mxu0 %v199
    %271 = vmatprep.subr.bf16.mxu0 %v198
    %272 = vmatpush1.bf16.msra.mxu0 %v197
    %273 = vmatprep.subr.bf16.mxu0 %v196
    %274 = vmatpush1.bf16.msra.mxu0 %v195
    %275 = vmatprep.subr.bf16.mxu0 %v226
    %276 = vmatpush2.bf16.msra.mxu0 %v225
    %277 = vmatprep.subr.bf16.mxu0 %v224
    %278 = vmatpush2.bf16.msra.mxu0 %v223
    %279 = vmatprep.subr.bf16.mxu0 %v222
    %280 = vmatpush2.bf16.msra.mxu0 %v221
    %281 = vmatprep.subr.bf16.mxu0 %v220
    %282 = vmatpush2.bf16.msra.mxu0 %v219
    %283 = vmatprep.subr.bf16.mxu0 %v218
    %284 = vmatpush2.bf16.msra.mxu0 %v217
    %285 = vmatprep.subr.bf16.mxu0 %v216
    %286 = vmatpush2.bf16.msra.mxu0 %v215
    %287 = vmatprep.subr.bf16.mxu0 %v214
    %288 = vmatpush2.bf16.msra.mxu0 %v213
    %289 = vmatprep.subr.bf16.mxu0 %v212
    %290 = vmatpush2.bf16.msra.mxu0 %v211
    %291 = vmatprep.mubr.bf16.mxu0 %v96
    %292 = vmatmul.mubr.bf16.gmra.mxu0 %v95
    %v293 = vpop.f32.mrf.mxu0
    %v294 = vadd.f32 0.0, %v293
    %v295 = vpop.f32.mrf.mxu0
    %v296 = vadd.f32 0.0, %v295
    %v297 = vpop.f32.mrf.mxu0
    %v298 = vadd.f32 0.0, %v297
    %v299 = vpop.f32.mrf.mxu0
    %v300 = vadd.f32 0.0, %v299
    %301 = vdwg.mxu0
    %v302 = vadd.f32 %v51, %v294
    %v303 = vadd.f32 %v52, %v296
    %v304 = vadd.f32 %v53, %v298
    %v305 = vadd.f32 %v54, %v300
    %306 = vst [vmem:[#allocation2] sm:$0xff] %v302
    %307 = vst [vmem:[#allocation2 + $0x8] sm:$0xff] %v303
    %308 = vst [vmem:[#allocation2 + $0x10] sm:$0xff] %v304
    %309 = vst [vmem:[#allocation2 + $0x18] sm:$0xff] %v305
    // Predicated region
    $region26: #{tpu_custom_call.1} parent=1 // pred_check
      %p310 = pneg %p43
    $region27: #{tpu_custom_call.1} parent=1 // pred_check_branch
      %312 = sbr.rel (%p310) target = $region29
    $region28: #{tpu_custom_call.1} parent=1 // pred_region
      %v313 = vld [vmem:[#allocation2] sm:$0xff]
      %v314 = vld [vmem:[#allocation2 + $0x8] sm:$0xff]
      %v315 = vld [vmem:[#allocation2 + $0x10] sm:$0xff]
      %v316 = vld [vmem:[#allocation2 + $0x18] sm:$0xff]
      %v317 = vld [vmem:[%s2] sm:$0x3]
      %v319 = vlaneseq
      %v320 = vshrl.u32 %v319, 7
      %v321 = vsub.s32 0, %v320
      %v322 = vrot.slane %v317, %v321
      %v323 = vlaneseq
      %v324 = vshrl.u32 %v323, 7
      %v325 = vsub.s32 1, %v324
      %v326 = vrot.slane %v317, %v325
      %v329 = vadd.f32 %v313, %v322
      %v330 = vadd.f32 %v314, %v326
      %v331 = vadd.f32 %v315, %v322
      %v332 = vadd.f32 %v316, %v326
      %v333 = vmax.f32 %v329, 0.0
      %v334 = vmax.f32 %v330, 0.0
      %v335 = vmax.f32 %v331, 0.0
      %v336 = vmax.f32 %v332, 0.0
      %v337 = vpack.c.bf16 %v335, %v333
      %v338 = vpack.c.bf16 %v336, %v334
      %v341 = vunpack.c.l.b16 %v337
      %v342 = vunpack.c.l.b16 %v338
      %v343 = vunpack.c.h.b16 %v337
      %v344 = vunpack.c.h.b16 %v338
      %v345 = vpack.c.b16 %v342, %v341
      %v346 = vpack.c.b16 %v344, %v343
      %349 = vst [vmem:[#allocation8] sm:$0xff] %v345
      %350 = vst [vmem:[#allocation8 + $0x8] sm:$0xff] %v346
    $region29: #{tpu_custom_call.1} parent=1 // pred_fallthru
      _
    // Predicated region
    $region30: #{tpu_custom_call.1} parent=1 // pred_check
      _
    $region31: #{tpu_custom_call.1} parent=1 // pred_check_branch
      %352 = sbr.rel (0) target = $region33
    $region32: #{tpu_custom_call.1} parent=1 // pred_region
      %s354 = ssub.s32 256, 256
      %355 = vsyncadd [#allocation5], %s354
      %s356 = sshll.u32 [#allocation8], 4
      %s357 = int_to_ptr.vmem [resolvable:$true] %s356
      %362 = dma.vmem_to_hbm [thread:$0]  %s357, 256, %s3, [#allocation5], 128, 128, 8
    $region33: #{tpu_custom_call.1} parent=1 // pred_fallthru
      _
    // Predicated region
    $region34: #{tpu_custom_call.1} parent=1 // pred_check
      _
    $region35: #{tpu_custom_call.1} parent=1 // pred_check_branch
      %364 = sbr.rel (0) target = $region37
    $region36: #{tpu_custom_call.1} parent=1 // pred_region
      %365 = dma.done [#allocation5], 256
    $region37: #{tpu_custom_call.1} parent=1 // pred_fallthru
      _
    %366 = vsyncpa [#allocation4], 1
    %367 = vsyncpa [#allocation7], 1
    %368 = vsyncpa [#allocation5], 1

</llo_original>
